<compile_context>
chip_gen: v6e
topology: v6e:2x2x1
jax: 0.10.0
libtpu: 0.0.40
codegen_flags: <defaults>
</compile_context>

<pallas_src>
import math

import jax
import jax.numpy as jnp
from jax.experimental import pallas as pl
from jax.experimental.pallas import tpu as pltpu

# ----- static configuration ------------------------------------------------
B = 2                      # batch
C_IN = 4                   # conv in_channels
L = 16                     # input_dim (sequence length)
K = 3                      # conv kernel_size
C_OUT = 8                  # conv out_channels
L_OUT = L - K + 1          # stride=1, padding=0 -> 14
FC_IN = C_OUT * L_OUT      # 112 (what DqnNet derives via the pseudo forward)
H1 = 32                    # fc_network_param units
A = 6                      # action_space

IN_FLAT = C_IN * L         # 64: row-major flatten of the NCL input (c_in*L + l)
PAD = 128                  # lane width: pad hidden/output dims to one MXU tile
SUBLANE = 8                # sublane multiple for f32 vregs


# ----- fused Pallas kernel ---------------------------------------------------
def fused_dqn_kernel(x_ref, w0_ref, b0_ref, w1_ref, b1_ref, wf_ref, bf_ref, o_ref):
    """Whole DqnNet forward for the (sublane-padded) batch in one grid point.

    x_ref : (BP, IN_FLAT)  row-major flatten of the (B, C_IN, L) input, rows
                           beyond the real batch are zero.
    w0_ref: (IN_FLAT, PAD) Toeplitz/unfold conv weight; valid cols = FC_IN,
                           col order c_out*L_OUT + l_out (== PyTorch .view flatten)
    b0_ref: (1, PAD)       conv bias per output column, zero in padded cols
    w1_ref: (PAD, PAD)     fc1 weight (FC_IN x H1 valid, zero-padded)
    b1_ref: (1, PAD)
    wf_ref: (PAD, PAD)     final weight (H1 x A valid, zero-padded)
    bf_ref: (1, PAD)
    o_ref : (BP, PAD)      sigmoid output, valid block = [:B, :A] (sliced outside)
    """
    x = x_ref[...]
    # Conv1d + channel-major flatten as one lane-dense matmul, then ReLU.
    h0 = jnp.dot(x, w0_ref[...], preferred_element_type=jnp.float32) + b0_ref[...]
    h0 = jnp.maximum(h0, 0.0)               # padded cols: relu(0) = 0
    # fc1 + ReLU
    h1 = jnp.dot(h0, w1_ref[...], preferred_element_type=jnp.float32) + b1_ref[...]
    h1 = jnp.maximum(h1, 0.0)               # padded cols: relu(0) = 0
    # final linear + sigmoid
    logits = jnp.dot(h1, wf_ref[...], preferred_element_type=jnp.float32) + bf_ref[...]
    o_ref[...] = jax.nn.sigmoid(logits).astype(o_ref.dtype)


# ----- one-time parameter packing (hoisted out of the per-call path) ---------
def pack_params(params):
    """Build the Toeplitz conv matrix and zero-pad everything to 128-wide tiles."""
    wc, bc, w1, b1, wf, bf = params

    # Toeplitz / unfold matrix fusing Conv1d(k=3, s=1, p=0) with PyTorch's
    # channel-major flatten:  W0[c_in*L + l, c_out*L_OUT + l_out]
    #   = wc[c_out, c_in, l - l_out]  if 0 <= l - l_out < K else 0
    l_idx = jnp.arange(L)[:, None]                   # (L, 1)
    lo_idx = jnp.arange(L_OUT)[None, :]              # (1, L_OUT)
    dk = l_idx - lo_idx                              # (L, L_OUT)
    valid = (dk >= 0) & (dk < K)
    dk_c = jnp.clip(dk, 0, K - 1)
    gathered = jnp.where(valid[None, None], wc[:, :, dk_c], 0.0)   # (C_OUT,C_IN,L,L_OUT)
    w0 = jnp.transpose(gathered, (1, 2, 0, 3)).reshape(IN_FLAT, FC_IN)
    b0 = jnp.repeat(bc, L_OUT)                       # (FC_IN,), index c_out*L_OUT+l_out

    def pad_to(m, rows, cols):
        return jnp.pad(m, ((0, rows - m.shape[0]), (0, cols - m.shape[1])))

    w0p = pad_to(w0, IN_FLAT, PAD)                   # (64, 128)
    b0p = pad_to(b0.reshape(1, FC_IN), 1, PAD)       # (1, 128)
    w1p = pad_to(w1.T, PAD, PAD)                     # (112, 32) -> (128, 128)
    b1p = pad_to(b1.reshape(1, H1), 1, PAD)          # (1, 128)
    wfp = pad_to(wf.T, PAD, PAD)                     # (32, 6)   -> (128, 128)
    bfp = pad_to(bf.reshape(1, A), 1, PAD)           # (1, 128)
    return w0p, b0p, w1p, b1p, wfp, bfp


# ----- wrapper ---------------------------------------------------------------
@jax.jit
def dqn_forward(x, packed):
    """x: (B, C_IN, L) float32 (PyTorch NCL layout). Returns (B, A) sigmoid outputs."""
    w0, b0, w1, b1, wf, bf = packed
    batch = x.shape[0]
    bp = max(SUBLANE, pl.cdiv(batch, SUBLANE) * SUBLANE)   # sublane-aligned batch
    x_flat = x.reshape(batch, IN_FLAT)                     # row-major (c_in, l) flatten
    x_pad = jnp.zeros((bp, IN_FLAT), jnp.float32).at[:batch].set(x_flat)

    out_pad = pl.pallas_call(
        fused_dqn_kernel,
        out_shape=jax.ShapeDtypeStruct((bp, PAD), jnp.float32),
        grid=(1,),
        in_specs=[
            pl.BlockSpec((bp, IN_FLAT), lambda i: (0, 0)),
            pl.BlockSpec((IN_FLAT, PAD), lambda i: (0, 0)),
            pl.BlockSpec((1, PAD), lambda i: (0, 0)),
            pl.BlockSpec((PAD, PAD), lambda i: (0, 0)),
            pl.BlockSpec((1, PAD), lambda i: (0, 0)),
            pl.BlockSpec((PAD, PAD), lambda i: (0, 0)),
            pl.BlockSpec((1, PAD), lambda i: (0, 0)),
        ],
        out_specs=pl.BlockSpec((bp, PAD), lambda i: (0, 0)),
        compiler_params=pltpu.CompilerParams(
            dimension_semantics=("arbitrary",)),     # size-1 grid, no megacore split
    )(x_pad, w0, b0, w1, b1, wf, bf)

    return out_pad[:batch, :A]                       # drop sublane/lane padding (fuses under jit)


# ----- deterministic parameter init (PyTorch-style uniform +/- 1/sqrt(fan_in)) ----
def init_params(key):
    ks = jax.random.split(key, 6)
    bc_bound = 1.0 / math.sqrt(C_IN * K)
    b1_bound = 1.0 / math.sqrt(FC_IN)
    bf_bound = 1.0 / math.sqrt(H1)
    wc = jax.random.uniform(ks[0], (C_OUT, C_IN, K), jnp.float32, -bc_bound, bc_bound)
    bc = jax.random.uniform(ks[1], (C_OUT,), jnp.float32, -bc_bound, bc_bound)
    w1 = jax.random.uniform(ks[2], (H1, FC_IN), jnp.float32, -b1_bound, b1_bound)
    b1 = jax.random.uniform(ks[3], (H1,), jnp.float32, -b1_bound, b1_bound)
    wf = jax.random.uniform(ks[4], (A, H1), jnp.float32, -bf_bound, bf_bound)
    bf = jax.random.uniform(ks[5], (A,), jnp.float32, -bf_bound, bf_bound)
    return wc, bc, w1, b1, wf, bf


# ----- pure-JAX reference of the PyTorch forward (for verification) ----------
def dqn_reference(x, params):
    wc, bc, w1, b1, wf, bf = params
    y = jax.lax.conv_general_dilated(
        x, wc, window_strides=(1,), padding="VALID",
        dimension_numbers=("NCH", "OIH", "NCH"))
    y = jnp.maximum(y + bc[None, :, None], 0.0)            # (B, C_OUT, L_OUT)
    flat = y.reshape(x.shape[0], -1)                       # PyTorch .view(-1, fc_in_dim)
    h1 = jnp.maximum(flat @ w1.T + b1, 0.0)
    return jax.nn.sigmoid(h1 @ wf.T + bf)


if __name__ == "__main__":
    root = jax.random.PRNGKey(0)
    kx, kp = jax.random.split(root)
    x = jax.random.normal(kx, (B, C_IN, L), dtype=jnp.float32)
    params = init_params(kp)

    packed = pack_params(params)                 # one-time packing / padding
    packed = jax.tree_util.tree_map(jax.block_until_ready, packed)

    out = dqn_forward(x, packed)
    out = jax.block_until_ready(out)

    ref = dqn_reference(x, params)
    assert out.shape == (B, A), out.shape
    assert jnp.allclose(out, ref, atol=1e-4, rtol=1e-4), (out, ref)

    print("KERNEL_OK")
</pallas_src>

<mosaic_0001>
module attributes {stable_mosaic.version = 11 : i64} {
  func.func @fused_dqn_kernel(%arg0: i32, %arg1: memref<8x64xf32, #tpu.memory_space<vmem>>, %arg2: memref<64x128xf32, #tpu.memory_space<vmem>>, %arg3: memref<1x128xf32, #tpu.memory_space<vmem>>, %arg4: memref<128x128xf32, #tpu.memory_space<vmem>>, %arg5: memref<1x128xf32, #tpu.memory_space<vmem>>, %arg6: memref<128x128xf32, #tpu.memory_space<vmem>>, %arg7: memref<1x128xf32, #tpu.memory_space<vmem>>, %arg8: memref<8x128xf32, #tpu.memory_space<vmem>>) attributes {dimension_semantics = [#tpu.dimension_semantics<arbitrary>], iteration_bounds = array<i64: 1>, scalar_prefetch = 0 : i64, scratch_operands = 0 : i64, tpu.core_type = #tpu.core_type<tc>, window_params = [{pipeline_mode = #tpu.pipeline_mode<synchronous>, transform_indices = @transform_0, window_bounds = array<i64: 8, 64>}, {pipeline_mode = #tpu.pipeline_mode<synchronous>, transform_indices = @transform_1, window_bounds = array<i64: 64, 128>}, {pipeline_mode = #tpu.pipeline_mode<synchronous>, transform_indices = @transform_2, window_bounds = array<i64: 1, 128>}, {pipeline_mode = #tpu.pipeline_mode<synchronous>, transform_indices = @transform_3, window_bounds = array<i64: 128, 128>}, {pipeline_mode = #tpu.pipeline_mode<synchronous>, transform_indices = @transform_4, window_bounds = array<i64: 1, 128>}, {pipeline_mode = #tpu.pipeline_mode<synchronous>, transform_indices = @transform_5, window_bounds = array<i64: 128, 128>}, {pipeline_mode = #tpu.pipeline_mode<synchronous>, transform_indices = @transform_6, window_bounds = array<i64: 1, 128>}, {pipeline_mode = #tpu.pipeline_mode<synchronous>, transform_indices = @transform_7, window_bounds = array<i64: 8, 128>}]} {
    %c0 = arith.constant 0 : index
    %c0_0 = arith.constant 0 : index
    %0 = vector.load %arg1[%c0, %c0_0] : memref<8x64xf32, #tpu.memory_space<vmem>>, vector<8x64xf32>
    %c0_1 = arith.constant 0 : index
    %c0_2 = arith.constant 0 : index
    %1 = vector.load %arg2[%c0_1, %c0_2] : memref<64x128xf32, #tpu.memory_space<vmem>>, vector<64x128xf32>
    %cst = arith.constant dense<0.000000e+00> : vector<8x128xf32>
    %2 = tpu.matmul %0, %1, %cst {dimension_numbers = #tpu.dot_dimension_numbers<[1], [0], [0], [1], [0, 0, 1, 1], [], []>} : vector<8x64xf32>, vector<64x128xf32>, vector<8x128xf32> -> vector<8x128xf32>
    %c0_3 = arith.constant 0 : index
    %c0_4 = arith.constant 0 : index
    %3 = vector.load %arg3[%c0_3, %c0_4] : memref<1x128xf32, #tpu.memory_space<vmem>>, vector<1x128xf32>
    %4 = vector.broadcast %3 : vector<1x128xf32> to vector<8x128xf32>
    %5 = arith.addf %2, %4 : vector<8x128xf32>
    %cst_5 = arith.constant 0.000000e+00 : f32
    %6 = vector.broadcast %cst_5 : f32 to vector<8x128xf32>
    %7 = arith.maximumf %5, %6 : vector<8x128xf32>
    %c0_6 = arith.constant 0 : index
    %c0_7 = arith.constant 0 : index
    %8 = vector.load %arg4[%c0_6, %c0_7] : memref<128x128xf32, #tpu.memory_space<vmem>>, vector<128x128xf32>
    %cst_8 = arith.constant dense<0.000000e+00> : vector<8x128xf32>
    %9 = tpu.matmul %7, %8, %cst_8 {dimension_numbers = #tpu.dot_dimension_numbers<[1], [0], [0], [1], [0, 0, 1, 1], [], []>} : vector<8x128xf32>, vector<128x128xf32>, vector<8x128xf32> -> vector<8x128xf32>
    %c0_9 = arith.constant 0 : index
    %c0_10 = arith.constant 0 : index
    %10 = vector.load %arg5[%c0_9, %c0_10] : memref<1x128xf32, #tpu.memory_space<vmem>>, vector<1x128xf32>
    %11 = vector.broadcast %10 : vector<1x128xf32> to vector<8x128xf32>
    %12 = arith.addf %9, %11 : vector<8x128xf32>
    %cst_11 = arith.constant 0.000000e+00 : f32
    %13 = vector.broadcast %cst_11 : f32 to vector<8x128xf32>
    %14 = arith.maximumf %12, %13 : vector<8x128xf32>
    %c0_12 = arith.constant 0 : index
    %c0_13 = arith.constant 0 : index
    %15 = vector.load %arg6[%c0_12, %c0_13] : memref<128x128xf32, #tpu.memory_space<vmem>>, vector<128x128xf32>
    %cst_14 = arith.constant dense<0.000000e+00> : vector<8x128xf32>
    %16 = tpu.matmul %14, %15, %cst_14 {dimension_numbers = #tpu.dot_dimension_numbers<[1], [0], [0], [1], [0, 0, 1, 1], [], []>} : vector<8x128xf32>, vector<128x128xf32>, vector<8x128xf32> -> vector<8x128xf32>
    %c0_15 = arith.constant 0 : index
    %c0_16 = arith.constant 0 : index
    %17 = vector.load %arg7[%c0_15, %c0_16] : memref<1x128xf32, #tpu.memory_space<vmem>>, vector<1x128xf32>
    %18 = vector.broadcast %17 : vector<1x128xf32> to vector<8x128xf32>
    %19 = arith.addf %16, %18 : vector<8x128xf32>
    %20 = arith.negf %19 : vector<8x128xf32>
    %21 = math.exp %20 : vector<8x128xf32>
    %cst_17 = arith.constant 1.000000e+00 : f32
    %22 = vector.broadcast %cst_17 : f32 to vector<8x128xf32>
    %23 = arith.addf %22, %21 : vector<8x128xf32>
    %24 = arith.divf %22, %23 : vector<8x128xf32>
    %c0_18 = arith.constant 0 : index
    %c0_19 = arith.constant 0 : index
    %25 = vector.load %arg8[%c0_18, %c0_19] : memref<8x128xf32, #tpu.memory_space<vmem>>, vector<8x128xf32>
    tpu.vector_store %arg8[%c0_18, %c0_19], %24 {strides = array<i32>} : memref<8x128xf32, #tpu.memory_space<vmem>>, vector<8x128xf32>,
    return
  }
  func.func @transform_0(%arg0: i32) -> (i32, i32) {
    %c0_i32 = arith.constant 0 : i32
    %c0_i32_0 = arith.constant 0 : i32
    %c0_i32_1 = arith.constant 0 : i32
    return %c0_i32, %c0_i32_0 : i32, i32
  }
  func.func @transform_1(%arg0: i32) -> (i32, i32) {
    %c0_i32 = arith.constant 0 : i32
    %c0_i32_0 = arith.constant 0 : i32
    %c0_i32_1 = arith.constant 0 : i32
    return %c0_i32, %c0_i32_0 : i32, i32
  }
  func.func @transform_2(%arg0: i32) -> (i32, i32) {
    %c0_i32 = arith.constant 0 : i32
    %c0_i32_0 = arith.constant 0 : i32
    %c0_i32_1 = arith.constant 0 : i32
    return %c0_i32, %c0_i32_0 : i32, i32
  }
  func.func @transform_3(%arg0: i32) -> (i32, i32) {
    %c0_i32 = arith.constant 0 : i32
    %c0_i32_0 = arith.constant 0 : i32
    %c0_i32_1 = arith.constant 0 : i32
    return %c0_i32, %c0_i32_0 : i32, i32
  }
  func.func @transform_4(%arg0: i32) -> (i32, i32) {
    %c0_i32 = arith.constant 0 : i32
    %c0_i32_0 = arith.constant 0 : i32
    %c0_i32_1 = arith.constant 0 : i32
    return %c0_i32, %c0_i32_0 : i32, i32
  }
  func.func @transform_5(%arg0: i32) -> (i32, i32) {
    %c0_i32 = arith.constant 0 : i32
    %c0_i32_0 = arith.constant 0 : i32
    %c0_i32_1 = arith.constant 0 : i32
    return %c0_i32, %c0_i32_0 : i32, i32
  }
  func.func @transform_6(%arg0: i32) -> (i32, i32) {
    %c0_i32 = arith.constant 0 : i32
    %c0_i32_0 = arith.constant 0 : i32
    %c0_i32_1 = arith.constant 0 : i32
    return %c0_i32, %c0_i32_0 : i32, i32
  }
  func.func @transform_7(%arg0: i32) -> (i32, i32) {
    %c0_i32 = arith.constant 0 : i32
    %c0_i32_0 = arith.constant 0 : i32
    %c0_i32_1 = arith.constant 0 : i32
    return %c0_i32, %c0_i32_0 : i32, i32
  }
}

</mosaic_0001>

<llo_original>
// kernel: dqn_forward.1
$region0: #{dqn_forward.1}
  #allocation0 [shape = 'u32[]', space=smem, size = 0x4, offset = 0x4, fixed_abs, tag = 'smem constant byte address 0x4 - core index']
  #allocation1 [shape = 'u32[144,128]{1,0:T(1,128)}', space=vmem, size = 0x12000, scoped, tag = 'internal scratch']
  %s0 = inlined_call_operand.vmem [shape: f32[8,64], index: 0, kind: input, shape index: {}]
  %s1 = inlined_call_operand.hbm [shape: f32[64,128], index: 1, kind: input, shape index: {}]
  %s2 = inlined_call_operand.vmem [shape: f32[1,128], index: 2, kind: input, shape index: {}]
  %s3 = inlined_call_operand.hbm [shape: f32[128,128], index: 3, kind: input, shape index: {}]
  %s4 = inlined_call_operand.vmem [shape: f32[1,128], index: 4, kind: input, shape index: {}]
  %s5 = inlined_call_operand.hbm [shape: f32[128,128], index: 5, kind: input, shape index: {}]
  %s6 = inlined_call_operand.vmem [shape: f32[1,128], index: 6, kind: input, shape index: {}]
  %s7 = inlined_call_operand.vmem [shape: f32[8,128], index: 7, kind: output, shape index: {}]
  %s8 = sld [smem:[#allocation0]]
  $region50: #{dqn_forward.1} parent=0
    _
  %s10 = ssub.s32 1, %s8
  %s11 = scalar_select 0, %s10, %s8
  $region1: #{dqn_forward.1} parent=0
    #allocation2 [shape = 'u8[32768]{0}', space=vmem, size = 0x8000, scoped, tag = 'input window, operand 1, single buffered']
    #allocation3 [shape = 's32[1]{0}', space=sflag, size = 0x4, scoped, tag = 'scoped memory for dqn_forward.1']
    #allocation4 [shape = 'u8[65536]{0}', space=vmem, size = 0x10000, scoped, tag = 'input window, operand 3, single buffered']
    #allocation5 [shape = 's32[1]{0}', space=sflag, size = 0x4, scoped, tag = 'scoped memory for dqn_forward.1']
    #allocation6 [shape = 'u8[65536]{0}', space=vmem, size = 0x10000, scoped, tag = 'input window, operand 5, single buffered']
    %12 = vsyncpa [#allocation3], 0
    %13 = vsyncpa [#allocation5], 0
    // Predicated region
    $region2: #{dqn_forward.1} parent=1 // pred_check
      _
    $region3: #{dqn_forward.1} parent=1 // pred_check_branch
      %15 = sbr.rel (0) target = $region5
    $region4: #{dqn_forward.1} parent=1 // pred_region
      _
    $region5: #{dqn_forward.1} parent=1 // pred_fallthru
      _
    // Predicated region
    $region6: #{dqn_forward.1} parent=1 // pred_check
      _
    $region7: #{dqn_forward.1} parent=1 // pred_check_branch
      %17 = sbr.rel (0) target = $region9
    $region8: #{dqn_forward.1} parent=1 // pred_region
      %s19 = ssub.s32 1024, 1024
      %20 = vsyncadd [#allocation3], %s19
      %s21 = sshll.u32 [#allocation2], 4
      %s22 = int_to_ptr.vmem [resolvable:$true] %s21
      %27 = dma.hbm_to_vmem [thread:$0]  %s1, 1024, %s22, [#allocation3], 128, 128, 8
    $region9: #{dqn_forward.1} parent=1 // pred_fallthru
      _
    // Predicated region
    $region10: #{dqn_forward.1} parent=1 // pred_check
      _
    $region11: #{dqn_forward.1} parent=1 // pred_check_branch
      %29 = sbr.rel (0) target = $region13
    $region12: #{dqn_forward.1} parent=1 // pred_region
      _
    $region13: #{dqn_forward.1} parent=1 // pred_fallthru
      _
    // Predicated region
    $region14: #{dqn_forward.1} parent=1 // pred_check
      _
    $region15: #{dqn_forward.1} parent=1 // pred_check_branch
      %31 = sbr.rel (0) target = $region17
    $region16: #{dqn_forward.1} parent=1 // pred_region
      %s33 = ssub.s32 2048, 2048
      %34 = vsyncadd [#allocation5], %s33
      %s35 = sshll.u32 [#allocation4], 4
      %s36 = int_to_ptr.vmem [resolvable:$true] %s35
      %41 = dma.hbm_to_vmem [thread:$0]  %s3, 2048, %s36, [#allocation5], 128, 128, 8
    $region17: #{dqn_forward.1} parent=1 // pred_fallthru
      _
    // Predicated region
    $region18: #{dqn_forward.1} parent=1 // pred_check
      _
    $region19: #{dqn_forward.1} parent=1 // pred_check_branch
      %43 = sbr.rel (0) target = $region21
    $region20: #{dqn_forward.1} parent=1 // pred_region
      _
    $region21: #{dqn_forward.1} parent=1 // pred_fallthru
      _
    // Predicated region
    $region22: #{dqn_forward.1} parent=1 // pred_check
      _
    $region23: #{dqn_forward.1} parent=1 // pred_check_branch
      %45 = sbr.rel (0) target = $region25
    $region24: #{dqn_forward.1} parent=1 // pred_region
      %s47 = ssub.s32 2048, 2048
      %48 = vsyncadd [#allocation5], %s47
      %s49 = sshll.u32 [#allocation6], 4
      %s50 = int_to_ptr.vmem [resolvable:$true] %s49
      %55 = dma.hbm_to_vmem [thread:$0]  %s5, 2048, %s50, [#allocation5], 128, 128, 8
    $region25: #{dqn_forward.1} parent=1 // pred_fallthru
      _
    // Predicated region
    $region26: #{dqn_forward.1} parent=1 // pred_check
      _
    $region27: #{dqn_forward.1} parent=1 // pred_check_branch
      %57 = sbr.rel (0) target = $region29
    $region28: #{dqn_forward.1} parent=1 // pred_region
      _
    $region29: #{dqn_forward.1} parent=1 // pred_fallthru
      _
    // Predicated region
    $region30: #{dqn_forward.1} parent=1 // pred_check
      _
    $region31: #{dqn_forward.1} parent=1 // pred_check_branch
      %59 = sbr.rel (0) target = $region33
    $region32: #{dqn_forward.1} parent=1 // pred_region
      %60 = dma.done [#allocation3], 1024
    $region33: #{dqn_forward.1} parent=1 // pred_fallthru
      _
    // Predicated region
    $region34: #{dqn_forward.1} parent=1 // pred_check
      _
    $region35: #{dqn_forward.1} parent=1 // pred_check_branch
      %62 = sbr.rel (0) target = $region37
    $region36: #{dqn_forward.1} parent=1 // pred_region
      %63 = dma.done [#allocation5], 2048
    $region37: #{dqn_forward.1} parent=1 // pred_fallthru
      _
    // Predicated region
    $region38: #{dqn_forward.1} parent=1 // pred_check
      _
    $region39: #{dqn_forward.1} parent=1 // pred_check_branch
      %65 = sbr.rel (0) target = $region41
    $region40: #{dqn_forward.1} parent=1 // pred_region
      %66 = dma.done [#allocation5], 2048
    $region41: #{dqn_forward.1} parent=1 // pred_fallthru
      _
    %v67 = vld [vmem:[%s0] sm:$0xff]
    %v68 = vld [vmem:[#allocation2] sm:$0xff]
    %v69 = vld [vmem:[#allocation2 + $0x8] sm:$0xff]
    %v70 = vld [vmem:[#allocation2 + $0x10] sm:$0xff]
    %v71 = vld [vmem:[#allocation2 + $0x18] sm:$0xff]
    %v72 = vld [vmem:[#allocation2 + $0x20] sm:$0xff]
    %v73 = vld [vmem:[#allocation2 + $0x28] sm:$0xff]
    %v74 = vld [vmem:[#allocation2 + $0x30] sm:$0xff]
    %v75 = vld [vmem:[#allocation2 + $0x38] sm:$0xff]
    %v76 = vld [vmem:[%s2] sm:$0x1]
    %v78 = vlaneseq
    %v79 = vshrl.u32 %v78, 7
    %v80 = vsub.s32 0, %v79
    %v81 = vrot.slane %v76, %v80
    %vm83 = vcmask 523264
    %v85 = vsel %vm83, %v67, 0
    %87 = vmatprep.subr.mxu0 0.0
    %88 = vmatpush1.msra.mxu0 0.0
    %89 = vmatprep.subr.mxu0 0.0
    %90 = vmatpush1.msra.mxu0 0.0
    %91 = vmatprep.subr.mxu0 0.0
    %92 = vmatpush1.msra.mxu0 0.0
    %93 = vmatprep.subr.mxu0 0.0
    %94 = vmatpush1.msra.mxu0 0.0
    %95 = vmatprep.subr.mxu0 0.0
    %96 = vmatpush1.msra.mxu0 0.0
    %97 = vmatprep.subr.mxu0 0.0
    %98 = vmatpush1.msra.mxu0 0.0
    %99 = vmatprep.subr.mxu0 0.0
    %100 = vmatpush1.msra.mxu0 0.0
    %101 = vmatprep.subr.mxu0 0.0
    %102 = vmatpush1.msra.mxu0 0.0
    %103 = vmatprep.subr.mxu0 0.0
    %104 = vmatpush1.msra.mxu0 %v75
    %105 = vmatprep.subr.mxu0 0.0
    %106 = vmatpush1.msra.mxu0 %v74
    %107 = vmatprep.subr.mxu0 0.0
    %108 = vmatpush1.msra.mxu0 %v73
    %109 = vmatprep.subr.mxu0 0.0
    %110 = vmatpush1.msra.mxu0 %v72
    %111 = vmatprep.subr.mxu0 0.0
    %112 = vmatpush1.msra.mxu0 %v71
    %113 = vmatprep.subr.mxu0 0.0
    %114 = vmatpush1.msra.mxu0 %v70
    %115 = vmatprep.subr.mxu0 0.0
    %116 = vmatpush1.msra.mxu0 %v69
    %117 = vmatprep.subr.mxu0 0.0
    %118 = vmatpush1.msra.mxu0 %v68
    %119 = vmatprep.subr.mxu0 0.0
    %120 = vmatpush2.msra.mxu0 0.0
    %121 = vmatprep.subr.mxu0 0.0
    %122 = vmatpush2.msra.mxu0 0.0
    %123 = vmatprep.subr.mxu0 0.0
    %124 = vmatpush2.msra.mxu0 0.0
    %125 = vmatprep.subr.mxu0 0.0
    %126 = vmatpush2.msra.mxu0 0.0
    %127 = vmatprep.subr.mxu0 0.0
    %128 = vmatpush2.msra.mxu0 0.0
    %129 = vmatprep.subr.mxu0 0.0
    %130 = vmatpush2.msra.mxu0 0.0
    %131 = vmatprep.subr.mxu0 0.0
    %132 = vmatpush2.msra.mxu0 0.0
    %133 = vmatprep.subr.mxu0 0.0
    %134 = vmatpush2.msra.mxu0 0.0
    %135 = vmatprep.subr.mxu0 0.0
    %136 = vmatpush2.msra.mxu0 0.0
    %137 = vmatprep.subr.mxu0 0.0
    %138 = vmatpush2.msra.mxu0 0.0
    %139 = vmatprep.subr.mxu0 0.0
    %140 = vmatpush2.msra.mxu0 0.0
    %141 = vmatprep.subr.mxu0 0.0
    %142 = vmatpush2.msra.mxu0 0.0
    %143 = vmatprep.subr.mxu0 0.0
    %144 = vmatpush2.msra.mxu0 0.0
    %145 = vmatprep.subr.mxu0 0.0
    %146 = vmatpush2.msra.mxu0 0.0
    %147 = vmatprep.subr.mxu0 0.0
    %148 = vmatpush2.msra.mxu0 0.0
    %149 = vmatprep.subr.mxu0 0.0
    %150 = vmatpush2.msra.mxu0 0.0
    %151 = vmatprep.mubr.f32.mxu0 0.0
    %152 = vmatmul.mubr.f32.gmra.mxu0 %v85
    %v153 = vpop.f32.mrf.mxu0
    %v154 = vadd.f32 %v81, %v153
    %v155 = vpop.f32.mrf.mxu0
    %156 = vdwg.mxu0
    %v157 = vmax.f32 %v154, 0.0
    %v158 = vld [vmem:[#allocation4] sm:$0xff]
    %v159 = vld [vmem:[#allocation4 + $0x8] sm:$0xff]
    %v160 = vld [vmem:[#allocation4 + $0x10] sm:$0xff]
    %v161 = vld [vmem:[#allocation4 + $0x18] sm:$0xff]
    %v162 = vld [vmem:[#allocation4 + $0x20] sm:$0xff]
    %v163 = vld [vmem:[#allocation4 + $0x28] sm:$0xff]
    %v164 = vld [vmem:[#allocation4 + $0x30] sm:$0xff]
    %v165 = vld [vmem:[#allocation4 + $0x38] sm:$0xff]
    %v166 = vld [vmem:[#allocation4 + $0x40] sm:$0xff]
    %v167 = vld [vmem:[#allocation4 + $0x48] sm:$0xff]
    %v168 = vld [vmem:[#allocation4 + $0x50] sm:$0xff]
    %v169 = vld [vmem:[#allocation4 + $0x58] sm:$0xff]
    %v170 = vld [vmem:[#allocation4 + $0x60] sm:$0xff]
    %v171 = vld [vmem:[#allocation4 + $0x68] sm:$0xff]
    %v172 = vld [vmem:[#allocation4 + $0x70] sm:$0xff]
    %v173 = vld [vmem:[#allocation4 + $0x78] sm:$0xff]
    %v174 = vld [vmem:[%s4] sm:$0x1]
    %v176 = vlaneseq
    %v177 = vshrl.u32 %v176, 7
    %v178 = vsub.s32 0, %v177
    %v179 = vrot.slane %v174, %v178
    %181 = vmatprep.subr.mxu0 0.0
    %182 = vmatpush1.msra.mxu0 %v173
    %183 = vmatprep.subr.mxu0 0.0
    %184 = vmatpush1.msra.mxu0 %v172
    %185 = vmatprep.subr.mxu0 0.0
    %186 = vmatpush1.msra.mxu0 %v171
    %187 = vmatprep.subr.mxu0 0.0
    %188 = vmatpush1.msra.mxu0 %v170
    %189 = vmatprep.subr.mxu0 0.0
    %190 = vmatpush1.msra.mxu0 %v169
    %191 = vmatprep.subr.mxu0 0.0
    %192 = vmatpush1.msra.mxu0 %v168
    %193 = vmatprep.subr.mxu0 0.0
    %194 = vmatpush1.msra.mxu0 %v167
    %195 = vmatprep.subr.mxu0 0.0
    %196 = vmatpush1.msra.mxu0 %v166
    %197 = vmatprep.subr.mxu0 0.0
    %198 = vmatpush1.msra.mxu0 %v165
    %199 = vmatprep.subr.mxu0 0.0
    %200 = vmatpush1.msra.mxu0 %v164
    %201 = vmatprep.subr.mxu0 0.0
    %202 = vmatpush1.msra.mxu0 %v163
    %203 = vmatprep.subr.mxu0 0.0
    %204 = vmatpush1.msra.mxu0 %v162
    %205 = vmatprep.subr.mxu0 0.0
    %206 = vmatpush1.msra.mxu0 %v161
    %207 = vmatprep.subr.mxu0 0.0
    %208 = vmatpush1.msra.mxu0 %v160
    %209 = vmatprep.subr.mxu0 0.0
    %210 = vmatpush1.msra.mxu0 %v159
    %211 = vmatprep.subr.mxu0 0.0
    %212 = vmatpush1.msra.mxu0 %v158
    %213 = vmatprep.subr.mxu0 0.0
    %214 = vmatpush2.msra.mxu0 0.0
    %215 = vmatprep.subr.mxu0 0.0
    %216 = vmatpush2.msra.mxu0 0.0
    %217 = vmatprep.subr.mxu0 0.0
    %218 = vmatpush2.msra.mxu0 0.0
    %219 = vmatprep.subr.mxu0 0.0
    %220 = vmatpush2.msra.mxu0 0.0
    %221 = vmatprep.subr.mxu0 0.0
    %222 = vmatpush2.msra.mxu0 0.0
    %223 = vmatprep.subr.mxu0 0.0
    %224 = vmatpush2.msra.mxu0 0.0
    %225 = vmatprep.subr.mxu0 0.0
    %226 = vmatpush2.msra.mxu0 0.0
    %227 = vmatprep.subr.mxu0 0.0
    %228 = vmatpush2.msra.mxu0 0.0
    %229 = vmatprep.subr.mxu0 0.0
    %230 = vmatpush2.msra.mxu0 0.0
    %231 = vmatprep.subr.mxu0 0.0
    %232 = vmatpush2.msra.mxu0 0.0
    %233 = vmatprep.subr.mxu0 0.0
    %234 = vmatpush2.msra.mxu0 0.0
    %235 = vmatprep.subr.mxu0 0.0
    %236 = vmatpush2.msra.mxu0 0.0
    %237 = vmatprep.subr.mxu0 0.0
    %238 = vmatpush2.msra.mxu0 0.0
    %239 = vmatprep.subr.mxu0 0.0
    %240 = vmatpush2.msra.mxu0 0.0
    %241 = vmatprep.subr.mxu0 0.0
    %242 = vmatpush2.msra.mxu0 0.0
    %243 = vmatprep.subr.mxu0 0.0
    %244 = vmatpush2.msra.mxu0 0.0
    %245 = vmatprep.mubr.f32.mxu0 0.0
    %246 = vmatmul.mubr.f32.gmra.mxu0 %v157
    %v247 = vpop.f32.mrf.mxu0
    %v248 = vadd.f32 %v179, %v247
    %v249 = vpop.f32.mrf.mxu0
    %250 = vdwg.mxu0
    %v251 = vmax.f32 %v248, 0.0
    %v252 = vld [vmem:[#allocation6] sm:$0xff]
    %v253 = vld [vmem:[#allocation6 + $0x8] sm:$0xff]
    %v254 = vld [vmem:[#allocation6 + $0x10] sm:$0xff]
    %v255 = vld [vmem:[#allocation6 + $0x18] sm:$0xff]
    %v256 = vld [vmem:[#allocation6 + $0x20] sm:$0xff]
    %v257 = vld [vmem:[#allocation6 + $0x28] sm:$0xff]
    %v258 = vld [vmem:[#allocation6 + $0x30] sm:$0xff]
    %v259 = vld [vmem:[#allocation6 + $0x38] sm:$0xff]
    %v260 = vld [vmem:[#allocation6 + $0x40] sm:$0xff]
    %v261 = vld [vmem:[#allocation6 + $0x48] sm:$0xff]
    %v262 = vld [vmem:[#allocation6 + $0x50] sm:$0xff]
    %v263 = vld [vmem:[#allocation6 + $0x58] sm:$0xff]
    %v264 = vld [vmem:[#allocation6 + $0x60] sm:$0xff]
    %v265 = vld [vmem:[#allocation6 + $0x68] sm:$0xff]
    %v266 = vld [vmem:[#allocation6 + $0x70] sm:$0xff]
    %v267 = vld [vmem:[#allocation6 + $0x78] sm:$0xff]
    %v268 = vld [vmem:[%s6] sm:$0x1]
    %v270 = vlaneseq
    %v271 = vshrl.u32 %v270, 7
    %v272 = vsub.s32 0, %v271
    %v273 = vrot.slane %v268, %v272
    %275 = vmatprep.subr.mxu0 0.0
    %276 = vmatpush1.msra.mxu0 %v267
    %277 = vmatprep.subr.mxu0 0.0
    %278 = vmatpush1.msra.mxu0 %v266
    %279 = vmatprep.subr.mxu0 0.0
    %280 = vmatpush1.msra.mxu0 %v265
    %281 = vmatprep.subr.mxu0 0.0
    %282 = vmatpush1.msra.mxu0 %v264
    %283 = vmatprep.subr.mxu0 0.0
    %284 = vmatpush1.msra.mxu0 %v263
    %285 = vmatprep.subr.mxu0 0.0
    %286 = vmatpush1.msra.mxu0 %v262
    %287 = vmatprep.subr.mxu0 0.0
    %288 = vmatpush1.msra.mxu0 %v261
    %289 = vmatprep.subr.mxu0 0.0
    %290 = vmatpush1.msra.mxu0 %v260
    %291 = vmatprep.subr.mxu0 0.0
    %292 = vmatpush1.msra.mxu0 %v259
    %293 = vmatprep.subr.mxu0 0.0
    %294 = vmatpush1.msra.mxu0 %v258
    %295 = vmatprep.subr.mxu0 0.0
    %296 = vmatpush1.msra.mxu0 %v257
    %297 = vmatprep.subr.mxu0 0.0
    %298 = vmatpush1.msra.mxu0 %v256
    %299 = vmatprep.subr.mxu0 0.0
    %300 = vmatpush1.msra.mxu0 %v255
    %301 = vmatprep.subr.mxu0 0.0
    %302 = vmatpush1.msra.mxu0 %v254
    %303 = vmatprep.subr.mxu0 0.0
    %304 = vmatpush1.msra.mxu0 %v253
    %305 = vmatprep.subr.mxu0 0.0
    %306 = vmatpush1.msra.mxu0 %v252
    %307 = vmatprep.subr.mxu0 0.0
    %308 = vmatpush2.msra.mxu0 0.0
    %309 = vmatprep.subr.mxu0 0.0
    %310 = vmatpush2.msra.mxu0 0.0
    %311 = vmatprep.subr.mxu0 0.0
    %312 = vmatpush2.msra.mxu0 0.0
    %313 = vmatprep.subr.mxu0 0.0
    %314 = vmatpush2.msra.mxu0 0.0
    %315 = vmatprep.subr.mxu0 0.0
    %316 = vmatpush2.msra.mxu0 0.0
    %317 = vmatprep.subr.mxu0 0.0
    %318 = vmatpush2.msra.mxu0 0.0
    %319 = vmatprep.subr.mxu0 0.0
    %320 = vmatpush2.msra.mxu0 0.0
    %321 = vmatprep.subr.mxu0 0.0
    %322 = vmatpush2.msra.mxu0 0.0
    %323 = vmatprep.subr.mxu0 0.0
    %324 = vmatpush2.msra.mxu0 0.0
    %325 = vmatprep.subr.mxu0 0.0
    %326 = vmatpush2.msra.mxu0 0.0
    %327 = vmatprep.subr.mxu0 0.0
    %328 = vmatpush2.msra.mxu0 0.0
    %329 = vmatprep.subr.mxu0 0.0
    %330 = vmatpush2.msra.mxu0 0.0
    %331 = vmatprep.subr.mxu0 0.0
    %332 = vmatpush2.msra.mxu0 0.0
    %333 = vmatprep.subr.mxu0 0.0
    %334 = vmatpush2.msra.mxu0 0.0
    %335 = vmatprep.subr.mxu0 0.0
    %336 = vmatpush2.msra.mxu0 0.0
    %337 = vmatprep.subr.mxu0 0.0
    %338 = vmatpush2.msra.mxu0 0.0
    %339 = vmatprep.mubr.f32.mxu0 0.0
    %340 = vmatmul.mubr.f32.gmra.mxu0 %v251
    %v341 = vpop.f32.mrf.mxu0
    %v342 = vadd.f32 %v273, %v341
    %v343 = vpop.f32.mrf.mxu0
    %344 = vdwg.mxu0
    %v345 = vxor.u32 %v342, 2147483648
    %v346 = vmul.f32 %v345, 1.442695
    %v347 = vpow.pop %v346
    %v348 = vadd.f32 %v347, 1.0
    %v349 = vrcp.pop %v348
    %v350 = vmul.f32 1.0, %v349
    %351 = vst [vmem:[%s7] sm:$0xff] %v350
    // Predicated region
    $region42: #{dqn_forward.1} parent=1 // pred_check
      _
    $region43: #{dqn_forward.1} parent=1 // pred_check_branch
      %353 = sbr.rel (0) target = $region45
    $region44: #{dqn_forward.1} parent=1 // pred_region
      _
    $region45: #{dqn_forward.1} parent=1 // pred_fallthru
      _
    // Predicated region
    $region46: #{dqn_forward.1} parent=1 // pred_check
      _
    $region47: #{dqn_forward.1} parent=1 // pred_check_branch
      %355 = sbr.rel (0) target = $region49
    $region48: #{dqn_forward.1} parent=1 // pred_region
      _
    $region49: #{dqn_forward.1} parent=1 // pred_fallthru
      _
    %356 = vsyncpa [#allocation3], 1
    %357 = vsyncpa [#allocation5], 1

</llo_original>
